<compile_context>
chip_gen: v7x
topology: tpu7x:2x2x1
jax: 0.10.0
libtpu: 0.0.40
codegen_flags: <defaults>
</compile_context>

<pallas_src>
import jax
import jax.numpy as jnp
from jax.experimental import pallas as pl
from jax.experimental.pallas import tpu as pltpu

_TARGET_BLOCK_BYTES = 8 * 1024 * 1024   # ~8 MiB per block
_VMEM_LIMIT_BYTES = 40 * 1024 * 1024    # explicit scoped-VMEM budget
_SPLIT_THRESHOLD_BYTES = 4 * 1024 * 1024  # force >=2 blocks above this size


def _identity_kernel(x_ref, o_ref):
    # Straight VMEM tile copy — the entire forward pass of `Reader`.
    o_ref[...] = x_ref[...]


def _sublane_multiple(dtype):
    """Packed sublane multiple: 8 for 4-byte, 16 for 2-byte, 32 for 1-byte."""
    itemsize = jnp.dtype(dtype).itemsize
    return max(8, 32 // max(itemsize, 1))


def _pick_lanes(total):
    """Largest lane width (multiple of 128) that divides `total`, else None."""
    for lanes in (512, 384, 256, 128):
        if total % lanes == 0:
            return lanes
    return None


def _pallas_identity_copy(x):
    """Explicit TPU streaming copy of `x` (bit-exact identity)."""
    orig_shape = x.shape
    dtype = x.dtype
    total = x.size
    if total == 0:
        return x

    itemsize = jnp.dtype(dtype).itemsize
    sub = _sublane_multiple(dtype)

    lanes = _pick_lanes(total)
    needs_pad = lanes is None
    if needs_pad:
        # TODO(synk): ragged totals (not a multiple of 128) still take a
        # pad + slice round-trip; could stream the aligned bulk and copy the
        # tail separately, but this path is rare and correctness-first.
        lanes = 512

    rows = pl.cdiv(total, lanes)
    flat = x.reshape(-1)
    if needs_pad:
        flat = jnp.pad(flat, (0, rows * lanes - total))
    x2 = flat.reshape(rows, lanes)

    # --- byte-budgeted tile height, dtype-aware sublane alignment ----------
    budget_rows = _TARGET_BLOCK_BYTES // (lanes * itemsize)
    tile_rows = max(sub, (budget_rows // sub) * sub)

    # v7x: make sure mid-size arrays still produce >=2 blocks so the
    # "parallel" axis feeds both TensorCores.
    total_bytes = total * itemsize
    if total_bytes >= _SPLIT_THRESHOLD_BYTES and rows >= 2 * sub:
        half = (rows // 2 // sub) * sub
        if half >= sub:
            tile_rows = min(tile_rows, half)

    if rows <= tile_rows:
        # Single block whose shape equals the full array dims (always legal).
        tile_rows = rows

    grid = (pl.cdiv(rows, tile_rows),)

    out2 = pl.pallas_call(
        _identity_kernel,
        out_shape=jax.ShapeDtypeStruct((rows, lanes), dtype),
        grid_spec=pltpu.PrefetchScalarGridSpec(
            num_scalar_prefetch=0,
            grid=grid,
            in_specs=[pl.BlockSpec((tile_rows, lanes), lambda i: (i, 0))],
            out_specs=pl.BlockSpec((tile_rows, lanes), lambda i: (i, 0)),
        ),
        compiler_params=pltpu.CompilerParams(
            dimension_semantics=("parallel",),
            vmem_limit_bytes=_VMEM_LIMIT_BYTES,
        ),
        # Alias the input buffer to the output: no second full-size HBM alloc.
        input_output_aliases={0: 0},
    )(x2)

    out_flat = out2.reshape(-1)
    if needs_pad:
        out_flat = out_flat[:total]
    return out_flat.reshape(orig_shape)


def reader_forward(x, *, force_pallas_copy=False):
    """Forward pass of `Reader`: identity.

    Default path returns `x` directly (zero HBM traffic — strictly better
    than any copy).  Set `force_pallas_copy=True` to route through the
    explicit Pallas streaming-copy kernel.
    """
    if not force_pallas_copy:
        return x
    return _pallas_identity_copy(x)


if __name__ == "__main__":
    key = jax.random.PRNGKey(0)

    # Small NCHW input consistent with an image-style module.
    x = jax.random.normal(key, (2, 4, 16, 16), dtype=jnp.float32)

    # Default (elided) path.
    y_fast = reader_forward(x)
    y_fast = jax.block_until_ready(y_fast)
    assert y_fast.shape == x.shape and y_fast.dtype == x.dtype
    assert bool(jnp.array_equal(y_fast, x)), "elided identity mismatch"

    # Explicit Pallas kernel path (single full-array block, lane-dense).
    y = reader_forward(x, force_pallas_copy=True)
    y = jax.block_until_ready(y)
    assert y.shape == x.shape and y.dtype == x.dtype
    assert bool(jnp.array_equal(y, x)), "pallas identity mismatch"

    # Mid-size input: exercises the multi-block ("parallel") grid path.
    x_big = jax.random.normal(jax.random.PRNGKey(2), (16, 16, 64, 64),
                              dtype=jnp.float32)  # 4 MiB -> 2 blocks
    y_big = jax.block_until_ready(reader_forward(x_big, force_pallas_copy=True))
    assert y_big.shape == x_big.shape and y_big.dtype == x_big.dtype
    assert bool(jnp.array_equal(y_big, x_big)), "pallas identity mismatch (big)"

    # Ragged input (total not a multiple of 128): exercises the pad fallback
    # and the bf16 (sublane-16) alignment path.
    x_rag = jax.random.normal(jax.random.PRNGKey(1), (3, 5, 7), dtype=jnp.bfloat16)
    y_rag = jax.block_until_ready(reader_forward(x_rag, force_pallas_copy=True))
    assert y_rag.shape == x_rag.shape and y_rag.dtype == x_rag.dtype
    assert bool(jnp.array_equal(y_rag, x_rag)), "pallas identity mismatch (ragged)"

    print("KERNEL_OK")
</pallas_src>

<mosaic_0001>
module attributes {stable_mosaic.version = 11 : i64} {
  func.func @_identity_kernel(%arg0: i32, %arg1: memref<4x512xf32, #tpu.memory_space<vmem>>, %arg2: memref<4x512xf32, #tpu.memory_space<vmem>>) attributes {dimension_semantics = [#tpu.dimension_semantics<parallel>], iteration_bounds = array<i64: 1>, scalar_prefetch = 0 : i64, scratch_operands = 0 : i64, tpu.core_type = #tpu.core_type<tc>, window_params = [{transform_indices = @transform_0, window_bounds = array<i64: 4, 512>}, {transform_indices = @transform_1, window_bounds = array<i64: 4, 512>}]} {
    %c0 = arith.constant 0 : index
    %c0_0 = arith.constant 0 : index
    %0 = vector.load %arg1[%c0, %c0_0] : memref<4x512xf32, #tpu.memory_space<vmem>>, vector<4x512xf32>
    %c0_1 = arith.constant 0 : index
    %c0_2 = arith.constant 0 : index
    %1 = vector.load %arg2[%c0_1, %c0_2] : memref<4x512xf32, #tpu.memory_space<vmem>>, vector<4x512xf32>
    tpu.vector_store %arg2[%c0_1, %c0_2], %0 {strides = array<i32>} : memref<4x512xf32, #tpu.memory_space<vmem>>, vector<4x512xf32>,
    return
  }
  func.func @transform_0(%arg0: i32) -> (i32, i32) {
    %c0_i32 = arith.constant 0 : i32
    %c0_i32_0 = arith.constant 0 : i32
    return %arg0, %c0_i32 : i32, i32
  }
  func.func @transform_1(%arg0: i32) -> (i32, i32) {
    %c0_i32 = arith.constant 0 : i32
    %c0_i32_0 = arith.constant 0 : i32
    return %arg0, %c0_i32 : i32, i32
  }
}

</mosaic_0001>

<llo_original>
// kernel: tpu_custom_call.1
$region0: #{tpu_custom_call.1}
  #allocation0 [shape = 'u32[]', space=smem, size = 0x4, offset = 0x4, fixed_abs, tag = 'smem constant byte address 0x4 - core index']
  #allocation1 [shape = 'u32[144,128]{1,0:T(1,128)}', space=vmem, size = 0x12000, scoped, tag = 'internal scratch']
  %s0 = inlined_call_operand.hbm [shape: f32[4,512], index: 0, kind: input, shape index: {}, may-alias: {0,1}]
  %s1 = inlined_call_operand.hbm [shape: f32[4,512], index: 1, kind: output, shape index: {}, may-alias: {0,1}]
  %s2 = sld [smem:[#allocation0]]
  $region18: #{tpu_custom_call.1} parent=0
    _
  %s4 = ssub.s32 1, %s2
  %s5 = scalar_select 0, %s4, %s2
  $region1: #{tpu_custom_call.1} parent=0
    #allocation2 [shape = 'u8[8192]{0}', space=vmem, size = 0x2000, scoped, tag = 'input window, operand 0, single buffered']
    #allocation3 [shape = 's32[1]{0}', space=sflag, size = 0x4, scoped, tag = 'scoped memory for tpu_custom_call.1']
    #allocation4 [shape = 's32[1]{0}', space=sflag, size = 0x4, scoped, tag = 'scoped memory for tpu_custom_call.1']
    #allocation5 [shape = 'u8[8192]{0}', space=vmem, size = 0x2000, scoped, tag = 'output window, operand 0, single buffered']
    %6 = vsyncpa [#allocation3], 0
    %7 = vsyncpa [#allocation4], 0
    // Predicated region
    $region2: #{tpu_custom_call.1} parent=1 // pred_check
      _
    $region3: #{tpu_custom_call.1} parent=1 // pred_check_branch
      %9 = sbr.rel (0) target = $region5
    $region4: #{tpu_custom_call.1} parent=1 // pred_region
      %s11 = ssub.s32 256, 256
      %12 = vsyncadd [#allocation3], %s11
      %s14 = sshll.u32 [#allocation2], 4
      %s15 = int_to_ptr.vmem [resolvable:$true] %s14
      %17 = dma.hbm_to_vmem [thread:$0]  %s0, 256, %s15, [#allocation3]
    $region5: #{tpu_custom_call.1} parent=1 // pred_fallthru
      _
    // Predicated region
    $region6: #{tpu_custom_call.1} parent=1 // pred_check
      _
    $region7: #{tpu_custom_call.1} parent=1 // pred_check_branch
      %19 = sbr.rel (0) target = $region9
    $region8: #{tpu_custom_call.1} parent=1 // pred_region
      %20 = dma.done [#allocation3], 256
    $region9: #{tpu_custom_call.1} parent=1 // pred_fallthru
      _
    %v21 = vld [vmem:[#allocation2] sm:$0xff]
    %v22 = vld [vmem:[#allocation2 + $0x8] sm:$0xff]
    %23 = vst [vmem:[#allocation5] sm:$0xff] %v21
    %24 = vst [vmem:[#allocation5 + $0x8] sm:$0xff] %v22
    // Predicated region
    $region10: #{tpu_custom_call.1} parent=1 // pred_check
      _
    $region11: #{tpu_custom_call.1} parent=1 // pred_check_branch
      %26 = sbr.rel (0) target = $region13
    $region12: #{tpu_custom_call.1} parent=1 // pred_region
      %s28 = ssub.s32 256, 256
      %29 = vsyncadd [#allocation4], %s28
      %s31 = sshll.u32 [#allocation5], 4
      %s32 = int_to_ptr.vmem [resolvable:$true] %s31
      %34 = dma.vmem_to_hbm [thread:$0]  %s32, 256, %s1, [#allocation4]
    $region13: #{tpu_custom_call.1} parent=1 // pred_fallthru
      _
    // Predicated region
    $region14: #{tpu_custom_call.1} parent=1 // pred_check
      _
    $region15: #{tpu_custom_call.1} parent=1 // pred_check_branch
      %36 = sbr.rel (0) target = $region17
    $region16: #{tpu_custom_call.1} parent=1 // pred_region
      %37 = dma.done [#allocation4], 256
    $region17: #{tpu_custom_call.1} parent=1 // pred_fallthru
      _
    %38 = vsyncpa [#allocation3], 1
    %39 = vsyncpa [#allocation4], 1

</llo_original>
